<compile_context>
chip_gen: v7x
topology: tpu7x:2x2x1
jax: 0.10.0
libtpu: 0.0.40
codegen_flags: <defaults>
</compile_context>

<pallas_src>
import numpy as np
import jax
import jax.numpy as jnp
from jax.experimental import pallas as pl
from jax.experimental.pallas import tpu as pltpu


# ----- configuration (RandomWireGCN(num_layers=6, features=32, p=0.6)) ---------------
NUM_LAYERS = 6      # number of GCNConv layers (ER-graph nodes)
FEATURES   = 32     # self.channels
P_ER       = 0.6    # ER edge probability
NUM_NODES  = 16     # number of graph (data) nodes -> len(x)
NUM_EDGES  = 40     # number of edges in edge_index
BATCH      = 16     # number of independent forward calls fused into one pallas_call


def build_er_out_nodes(n: int, p: float, seed: int = 0):
    """Deterministic replica of create_er(): directed G(n, p), keep edges u < v (DAG
       whose node set is only kept-edge endpoints); out_nodes = DAG nodes with
       out_degree == 0."""
    rng = np.random.default_rng(seed)
    edges = []
    for u in range(n):
        for v in range(u + 1, n):
            if rng.random() < p:
                edges.append((u, v))
    dag_nodes = sorted({u for u, _ in edges} | {v for _, v in edges})
    has_outgoing = {u for u, _ in edges}
    return [nd for nd in dag_nodes if nd not in has_outgoing]


def normalized_adjacency(edge_index: jnp.ndarray, num_nodes: int) -> jnp.ndarray:
    """Dense A_hat = D^-1/2 (A + I) D^-1/2 (PyG GCNConv default normalization).
       A_hat[t, s] = weight of message source s -> target t."""
    src, tgt = edge_index[0], edge_index[1]
    loops = jnp.arange(num_nodes, dtype=edge_index.dtype)
    src = jnp.concatenate([src, loops])
    tgt = jnp.concatenate([tgt, loops])
    adj = jnp.zeros((num_nodes, num_nodes), jnp.float32).at[tgt, src].add(1.0)
    deg = adj.sum(axis=1)
    dinv = jnp.where(deg > 0, 1.0 / jnp.sqrt(deg), 0.0)
    return adj * dinv[:, None] * dinv[None, :]


# --------------------------------- Pallas kernel -------------------------------------
def rwgcn_kernel(xt_ref, adjbd_ref, wt_ref, b_ref, s_ref, out_ref):
    """One grid step = TB examples packed along the lane axis.
         xt_ref : (C, TB*N)      transposed features, lane block b = X_b^T
         adjbd  : (TB*N, TB*N)   kron(I_TB, A_hat^T)
         wt_ref : (L*C, C)       stacked W_o^T for the out-node layers
         b_ref  : (L*C, TB*N)    stacked biases, pre-broadcast over lanes
         s_ref  : (C, L*C)       [I_C ... I_C] / L  (sum over out-layers + 1/L scale)
         out    : (C, TB*N)
       out = s @ relu( (w_t @ x_t) @ adj_bd + b )   -- three lane-dense MXU matmuls.
    """
    z = jnp.dot(wt_ref[...], xt_ref[...], preferred_element_type=jnp.float32)
    h = jnp.dot(z, adjbd_ref[...], preferred_element_type=jnp.float32) + b_ref[...]
    h = jnp.maximum(h, 0.0)
    out_ref[...] = jnp.dot(s_ref[...], h,
                           preferred_element_type=jnp.float32).astype(out_ref.dtype)


# --------------------------------- wrapper -------------------------------------------
def make_rwgcn_forward(edge_index, weights, biases, out_nodes, num_nodes, batch):
    """Precompute all static operands once and return a jitted batched forward:
         forward(xb) with xb (B, N, C)  ->  (B, N, C)
       Each batch element is one forward call of the original module on the same graph."""
    n = num_nodes
    c = weights.shape[-1]
    l_out = len(out_nodes)
    if l_out == 0:
        raise ValueError("ER graph produced no out-nodes")

    # Pick TB so a block spans >= 128 lanes (full lane tile). Fall back to a single
    # full-extent block if that tiling does not divide evenly.
    tb = max(1, -(-128 // n))
    if batch % tb != 0 or (tb * n) % 128 != 0:
        tb = batch                      # single full-extent block, always legal
    lanes = tb * n
    lc = l_out * c
    grid = (batch // tb,)

    # ---- static prep (hoisted out of the per-call path) ----
    adj = normalized_adjacency(edge_index, n)                                  # (N, N)
    adj_bd = jnp.kron(jnp.eye(tb, dtype=jnp.float32), adj.T)                   # (lanes, lanes)
    out_idx = jnp.asarray(out_nodes)
    w_t = jnp.transpose(weights[out_idx], (0, 2, 1)).reshape(lc, c)            # (L*C, C)
    b_tile = jnp.broadcast_to(biases[out_idx].reshape(lc, 1), (lc, lanes)) + 0.0
    s_mat = jnp.tile(jnp.eye(c, dtype=jnp.float32), (1, l_out)) / float(l_out)  # (C, L*C)

    fused = pl.pallas_call(
        rwgcn_kernel,
        out_shape=jax.ShapeDtypeStruct((c, batch * n), jnp.float32),
        grid_spec=pltpu.PrefetchScalarGridSpec(
            num_scalar_prefetch=0,
            grid=grid,
            in_specs=[
                pl.BlockSpec((c, lanes), lambda i: (0, i)),        # x_t: per-step block
                pl.BlockSpec((lanes, lanes), lambda i: (0, 0)),    # adj_bd: resident
                pl.BlockSpec((lc, c), lambda i: (0, 0)),           # w_t: resident
                pl.BlockSpec((lc, lanes), lambda i: (0, 0)),       # bias tile: resident
                pl.BlockSpec((c, lc), lambda i: (0, 0)),           # reduction mat: resident
            ],
            out_specs=pl.BlockSpec((c, lanes), lambda i: (0, i)),
        ),
        compiler_params=pltpu.CompilerParams(
            dimension_semantics=("parallel",),   # v7x: split batch blocks across 2 TCs
        ),
    )

    @jax.jit
    def forward(xb):                                   # xb: (B, N, C)
        x_t = jnp.transpose(xb, (2, 0, 1)).reshape(c, batch * n)      # lane-dense slab
        out_t = fused(x_t, adj_bd, w_t, b_tile, s_mat)                # (C, B*N)
        return jnp.transpose(out_t.reshape(c, batch, n), (1, 2, 0))   # back to (B, N, C)

    return forward


# ------------------------------ reference (plain JAX) --------------------------------
def reference_forward(xb, edge_index, weights, biases, out_nodes):
    adj = normalized_adjacency(edge_index, xb.shape[1])
    inv = 1.0 / len(out_nodes)
    outs = []
    for b in range(xb.shape[0]):
        out = jnp.zeros_like(xb[b])
        for o in out_nodes:
            h = adj @ (xb[b] @ weights[o]) + biases[o]
            out = out + jnp.maximum(h, 0.0) * inv
        outs.append(out)
    return jnp.stack(outs)


if __name__ == "__main__":
    out_nodes = build_er_out_nodes(NUM_LAYERS, P_ER, seed=0)
    assert len(out_nodes) > 0, "ER graph produced no out-nodes (adjust seed/p)"

    key = jax.random.PRNGKey(0)
    kx, ke, kw, kb = jax.random.split(key, 4)

    xb = jax.random.normal(kx, (BATCH, NUM_NODES, FEATURES), dtype=jnp.float32)
    edge_index = jax.random.randint(
        ke, (2, NUM_EDGES), minval=0, maxval=NUM_NODES, dtype=jnp.int32)
    weights = jax.random.normal(
        kw, (NUM_LAYERS, FEATURES, FEATURES), dtype=jnp.float32) / jnp.sqrt(
            jnp.float32(FEATURES))
    biases = 0.1 * jax.random.normal(kb, (NUM_LAYERS, FEATURES), dtype=jnp.float32)

    forward = make_rwgcn_forward(edge_index, weights, biases, out_nodes,
                                 NUM_NODES, BATCH)
    out = jax.block_until_ready(forward(xb))

    ref = reference_forward(xb, edge_index, weights, biases, out_nodes)
    assert out.shape == (BATCH, NUM_NODES, FEATURES)
    assert jnp.allclose(out, ref, atol=1e-3, rtol=1e-3), "mismatch vs. JAX reference"

    print("KERNEL_OK")
</pallas_src>

<mosaic_0001>
module attributes {stable_mosaic.version = 11 : i64} {
  func.func @rwgcn_kernel(%arg0: i32, %arg1: memref<32x128xf32, #tpu.memory_space<vmem>>, %arg2: memref<128x128xf32, #tpu.memory_space<vmem>>, %arg3: memref<64x32xf32, #tpu.memory_space<vmem>>, %arg4: memref<64x128xf32, #tpu.memory_space<vmem>>, %arg5: memref<32x64xf32, #tpu.memory_space<vmem>>, %arg6: memref<32x128xf32, #tpu.memory_space<vmem>>) attributes {dimension_semantics = [#tpu.dimension_semantics<parallel>], iteration_bounds = array<i64: 2>, scalar_prefetch = 0 : i64, scratch_operands = 0 : i64, tpu.core_type = #tpu.core_type<tc>, window_params = [{transform_indices = @transform_0, window_bounds = array<i64: 32, 128>}, {pipeline_mode = #tpu.pipeline_mode<synchronous>, transform_indices = @transform_1, window_bounds = array<i64: 128, 128>}, {pipeline_mode = #tpu.pipeline_mode<synchronous>, transform_indices = @transform_2, window_bounds = array<i64: 64, 32>}, {pipeline_mode = #tpu.pipeline_mode<synchronous>, transform_indices = @transform_3, window_bounds = array<i64: 64, 128>}, {pipeline_mode = #tpu.pipeline_mode<synchronous>, transform_indices = @transform_4, window_bounds = array<i64: 32, 64>}, {transform_indices = @transform_5, window_bounds = array<i64: 32, 128>}]} {
    %c0 = arith.constant 0 : index
    %c0_0 = arith.constant 0 : index
    %0 = vector.load %arg3[%c0, %c0_0] : memref<64x32xf32, #tpu.memory_space<vmem>>, vector<64x32xf32>
    %c0_1 = arith.constant 0 : index
    %c0_2 = arith.constant 0 : index
    %1 = vector.load %arg1[%c0_1, %c0_2] : memref<32x128xf32, #tpu.memory_space<vmem>>, vector<32x128xf32>
    %cst = arith.constant dense<0.000000e+00> : vector<64x128xf32>
    %2 = tpu.matmul %0, %1, %cst {dimension_numbers = #tpu.dot_dimension_numbers<[1], [0], [0], [1], [0, 0, 1, 1], [], []>} : vector<64x32xf32>, vector<32x128xf32>, vector<64x128xf32> -> vector<64x128xf32>
    %c0_3 = arith.constant 0 : index
    %c0_4 = arith.constant 0 : index
    %3 = vector.load %arg2[%c0_3, %c0_4] : memref<128x128xf32, #tpu.memory_space<vmem>>, vector<128x128xf32>
    %cst_5 = arith.constant dense<0.000000e+00> : vector<64x128xf32>
    %4 = tpu.matmul %2, %3, %cst_5 {dimension_numbers = #tpu.dot_dimension_numbers<[1], [0], [0], [1], [0, 0, 1, 1], [], []>} : vector<64x128xf32>, vector<128x128xf32>, vector<64x128xf32> -> vector<64x128xf32>
    %c0_6 = arith.constant 0 : index
    %c0_7 = arith.constant 0 : index
    %5 = vector.load %arg4[%c0_6, %c0_7] : memref<64x128xf32, #tpu.memory_space<vmem>>, vector<64x128xf32>
    %6 = arith.addf %4, %5 : vector<64x128xf32>
    %cst_8 = arith.constant 0.000000e+00 : f32
    %7 = vector.broadcast %cst_8 : f32 to vector<64x128xf32>
    %8 = arith.maximumf %6, %7 : vector<64x128xf32>
    %c0_9 = arith.constant 0 : index
    %c0_10 = arith.constant 0 : index
    %9 = vector.load %arg5[%c0_9, %c0_10] : memref<32x64xf32, #tpu.memory_space<vmem>>, vector<32x64xf32>
    %cst_11 = arith.constant dense<0.000000e+00> : vector<32x128xf32>
    %10 = tpu.matmul %9, %8, %cst_11 {dimension_numbers = #tpu.dot_dimension_numbers<[1], [0], [0], [1], [0, 0, 1, 1], [], []>} : vector<32x64xf32>, vector<64x128xf32>, vector<32x128xf32> -> vector<32x128xf32>
    %c0_12 = arith.constant 0 : index
    %c0_13 = arith.constant 0 : index
    %11 = vector.load %arg6[%c0_12, %c0_13] : memref<32x128xf32, #tpu.memory_space<vmem>>, vector<32x128xf32>
    tpu.vector_store %arg6[%c0_12, %c0_13], %10 {strides = array<i32>} : memref<32x128xf32, #tpu.memory_space<vmem>>, vector<32x128xf32>,
    return
  }
  func.func @transform_0(%arg0: i32) -> (i32, i32) {
    %c0_i32 = arith.constant 0 : i32
    %c0_i32_0 = arith.constant 0 : i32
    return %c0_i32, %arg0 : i32, i32
  }
  func.func @transform_1(%arg0: i32) -> (i32, i32) {
    %c0_i32 = arith.constant 0 : i32
    %c0_i32_0 = arith.constant 0 : i32
    %c0_i32_1 = arith.constant 0 : i32
    return %c0_i32, %c0_i32_0 : i32, i32
  }
  func.func @transform_2(%arg0: i32) -> (i32, i32) {
    %c0_i32 = arith.constant 0 : i32
    %c0_i32_0 = arith.constant 0 : i32
    %c0_i32_1 = arith.constant 0 : i32
    return %c0_i32, %c0_i32_0 : i32, i32
  }
  func.func @transform_3(%arg0: i32) -> (i32, i32) {
    %c0_i32 = arith.constant 0 : i32
    %c0_i32_0 = arith.constant 0 : i32
    %c0_i32_1 = arith.constant 0 : i32
    return %c0_i32, %c0_i32_0 : i32, i32
  }
  func.func @transform_4(%arg0: i32) -> (i32, i32) {
    %c0_i32 = arith.constant 0 : i32
    %c0_i32_0 = arith.constant 0 : i32
    %c0_i32_1 = arith.constant 0 : i32
    return %c0_i32, %c0_i32_0 : i32, i32
  }
  func.func @transform_5(%arg0: i32) -> (i32, i32) {
    %c0_i32 = arith.constant 0 : i32
    %c0_i32_0 = arith.constant 0 : i32
    return %c0_i32, %arg0 : i32, i32
  }
}

</mosaic_0001>

<llo_original>
// kernel: forward.1
$region0: #{forward.1}
  #allocation0 [shape = 'u32[]', space=smem, size = 0x4, offset = 0x4, fixed_abs, tag = 'smem constant byte address 0x4 - core index']
  #allocation1 [shape = 'u32[144,128]{1,0:T(1,128)}', space=vmem, size = 0x12000, scoped, tag = 'internal scratch']
  %s0 = inlined_call_operand.vmem [shape: f32[32,256], index: 0, kind: input, shape index: {}]
  %s1 = inlined_call_operand.vmem [shape: f32[128,128], index: 1, kind: input, shape index: {}]
  %s2 = inlined_call_operand.vmem [shape: f32[64,32], index: 2, kind: input, shape index: {}]
  %s3 = inlined_call_operand.vmem [shape: f32[64,128], index: 3, kind: input, shape index: {}]
  %s4 = inlined_call_operand.vmem [shape: f32[32,64], index: 4, kind: input, shape index: {}]
  %s5 = inlined_call_operand.vmem [shape: f32[32,256], index: 5, kind: output, shape index: {}]
  %s6 = sld [smem:[#allocation0]]
  $region125: #{forward.1} parent=0
    _
  %s8 = ssub.s32 1, %s6
  %s9 = scalar_select 0, %s8, %s6
  $region1: #{forward.1} parent=0
    #allocation2 [shape = 'u8[32768]{0}', space=vmem, size = 0x8000, scoped, tag = 'input window, operand 0']
    #allocation3 [shape = 'u8[32768]{0}', space=vmem, size = 0x8000, scoped, tag = 'output window, operand 0']
    loop: start=0, step=1, limit=4
    $region2: #{forward.1} parent=1 // loop_pre_header
      _
    $region3: #{forward.1} parent=1 // loop_header
      %s11 = sphi 0, %s15
      %p12 = scmp.ge.s32.totalorder %s11, 4
      %s21 = sphi 0, %s23
      %s24 = sphi 0, %s21
      %s25 = sphi 0, %s24
      %s41 = sphi 0, %s25
      %s45 = sphi 0, %s45
      %s47 = sphi 0, %s45
      %s48 = sphi 0, %s47
      %s62 = sphi 0, %s48
      %s66 = sphi 0, %s66
      %s68 = sphi 0, %s66
      %s69 = sphi 0, %s68
      %s83 = sphi 0, %s69
      %s87 = sphi 0, %s87
      %s89 = sphi 0, %s87
      %s90 = sphi 0, %s89
      %s104 = sphi 0, %s90
      %s108 = sphi 0, %s108
      %s110 = sphi 0, %s108
      %s111 = sphi 0, %s110
      %s125 = sphi 0, %s111
      %s131 = sphi 0, %s133
      %s134 = sphi 0, %s131
      %s135 = sphi 0, %s134
      %s151 = sphi 0, %s135
    $region4: #{forward.1} parent=1 // loop_header_branch
      %14 = sbr.rel (%p12) target = $region8
    $region5: #{forward.1} parent=1 // loop_body
      %s16 = ssub.s32 %s11, 1
      %s17 = ssub.s32 %s11, 2
      %s18 = sadd.s32 %s11, 1
      %s19 = ssub.s32 %s11, %s18
      %p20 = scmp.eq.s32.totalorder %s19, 0
      %s22 = sadd.s32 %s21, 1
      %s23 = scalar_select %p20, %s21, %s22
      %p26 = pneg %p20
      %p27 = scmp.eq.s32.totalorder %s11, 1
      %p28 = por %p26, %p27
      %p29 = scmp.ne.s32.totalorder %s21, %s24
      %p30 = scmp.eq.s32.totalorder %s11, 0
      %p31 = por %p29, %p30
      %p32 = scmp.ne.s32.totalorder %s21, %s24
      %p33 = scmp.eq.s32.totalorder %s16, 1
      %p34 = por %p32, %p33
      %p35 = scmp.ne.s32.totalorder %s24, %s25
      %p36 = scmp.eq.s32.totalorder %s16, 0
      %p37 = por %p35, %p36
      %p38 = scmp.ne.s32.totalorder %s24, %s25
      %p39 = scmp.eq.s32.totalorder %s17, 1
      %p40 = por %p38, %p39
      %p42 = scmp.ne.s32.totalorder %s25, %s41
      %p43 = scmp.eq.s32.totalorder %s17, 0
      %p44 = por %p42, %p43
      %s46 = sadd.s32 %s45, 1
      %p49 = scmp.eq.s32.totalorder %s11, 1
      %p50 = scmp.ne.s32.totalorder %s45, %s47
      %p51 = scmp.eq.s32.totalorder %s11, 0
      %p52 = por %p50, %p51
      %p53 = scmp.ne.s32.totalorder %s45, %s47
      %p54 = scmp.eq.s32.totalorder %s16, 1
      %p55 = por %p53, %p54
      %p56 = scmp.ne.s32.totalorder %s47, %s48
      %p57 = scmp.eq.s32.totalorder %s16, 0
      %p58 = por %p56, %p57
      %p59 = scmp.ne.s32.totalorder %s47, %s48
      %p60 = scmp.eq.s32.totalorder %s17, 1
      %p61 = por %p59, %p60
      %p63 = scmp.ne.s32.totalorder %s48, %s62
      %p64 = scmp.eq.s32.totalorder %s17, 0
      %p65 = por %p63, %p64
      %s67 = sadd.s32 %s66, 1
      %p70 = scmp.eq.s32.totalorder %s11, 1
      %p71 = scmp.ne.s32.totalorder %s66, %s68
      %p72 = scmp.eq.s32.totalorder %s11, 0
      %p73 = por %p71, %p72
      %p74 = scmp.ne.s32.totalorder %s66, %s68
      %p75 = scmp.eq.s32.totalorder %s16, 1
      %p76 = por %p74, %p75
      %p77 = scmp.ne.s32.totalorder %s68, %s69
      %p78 = scmp.eq.s32.totalorder %s16, 0
      %p79 = por %p77, %p78
      %p80 = scmp.ne.s32.totalorder %s68, %s69
      %p81 = scmp.eq.s32.totalorder %s17, 1
      %p82 = por %p80, %p81
      %p84 = scmp.ne.s32.totalorder %s69, %s83
      %p85 = scmp.eq.s32.totalorder %s17, 0
      %p86 = por %p84, %p85
      %s88 = sadd.s32 %s87, 1
      %p91 = scmp.eq.s32.totalorder %s11, 1
      %p92 = scmp.ne.s32.totalorder %s87, %s89
      %p93 = scmp.eq.s32.totalorder %s11, 0
      %p94 = por %p92, %p93
      %p95 = scmp.ne.s32.totalorder %s87, %s89
      %p96 = scmp.eq.s32.totalorder %s16, 1
      %p97 = por %p95, %p96
      %p98 = scmp.ne.s32.totalorder %s89, %s90
      %p99 = scmp.eq.s32.totalorder %s16, 0
      %p100 = por %p98, %p99
      %p101 = scmp.ne.s32.totalorder %s89, %s90
      %p102 = scmp.eq.s32.totalorder %s17, 1
      %p103 = por %p101, %p102
      %p105 = scmp.ne.s32.totalorder %s90, %s104
      %p106 = scmp.eq.s32.totalorder %s17, 0
      %p107 = por %p105, %p106
      %s109 = sadd.s32 %s108, 1
      %p112 = scmp.eq.s32.totalorder %s11, 1
      %p113 = scmp.ne.s32.totalorder %s108, %s110
      %p114 = scmp.eq.s32.totalorder %s11, 0
      %p115 = por %p113, %p114
      %p116 = scmp.ne.s32.totalorder %s108, %s110
      %p117 = scmp.eq.s32.totalorder %s16, 1
      %p118 = por %p116, %p117
      %p119 = scmp.ne.s32.totalorder %s110, %s111
      %p120 = scmp.eq.s32.totalorder %s16, 0
      %p121 = por %p119, %p120
      %p122 = scmp.ne.s32.totalorder %s110, %s111
      %p123 = scmp.eq.s32.totalorder %s17, 1
      %p124 = por %p122, %p123
      %p126 = scmp.ne.s32.totalorder %s111, %s125
      %p127 = scmp.eq.s32.totalorder %s17, 0
      %p128 = por %p126, %p127
      %s129 = ssub.s32 %s11, %s18
      %p130 = scmp.eq.s32.totalorder %s129, 0
      %s132 = sadd.s32 %s131, 1
      %s133 = scalar_select %p130, %s131, %s132
      %p136 = pneg %p130
      %p137 = scmp.eq.s32.totalorder %s11, 1
      %p138 = por %p136, %p137
      %p139 = scmp.ne.s32.totalorder %s131, %s134
      %p140 = scmp.eq.s32.totalorder %s11, 0
      %p141 = por %p139, %p140
      %p142 = scmp.ne.s32.totalorder %s131, %s134
      %p143 = scmp.eq.s32.totalorder %s16, 1
      %p144 = por %p142, %p143
      %p145 = scmp.ne.s32.totalorder %s134, %s135
      %p146 = scmp.eq.s32.totalorder %s16, 0
      %p147 = por %p145, %p146
      %p148 = scmp.ne.s32.totalorder %s134, %s135
      %p149 = scmp.eq.s32.totalorder %s17, 1
      %p150 = por %p148, %p149
      %p152 = scmp.ne.s32.totalorder %s135, %s151
      %p153 = scmp.eq.s32.totalorder %s17, 0
      %p154 = por %p152, %p153
      %p155 = scmp.le.s32.totalorder 1, %s11
      %p156 = scmp.lt.s32.totalorder %s11, 3
      %p157 = pnand %p155, %p156
      %p158 = pneg %p157
      // Predicated region
      $region9: #{forward.1} parent=5 // pred_check
        _
      $region10: #{forward.1} parent=5 // pred_check_branch
        %160 = sbr.rel (%p157) target = $region12
      $region11: #{forward.1} parent=5 // pred_region
        %s161 = ssub.s32 %s11, 1
        // Predicated region
        $region13: #{forward.1} parent=11 // pred_check
          %p162 = pneg %p58
        $region14: #{forward.1} parent=11 // pred_check_branch
          %164 = sbr.rel (%p162) target = $region16
        $region15: #{forward.1} parent=11 // pred_region
          _
        $region16: #{forward.1} parent=11 // pred_fallthru
          _
        // Predicated region
        $region17: #{forward.1} parent=11 // pred_check
          %p165 = pneg %p79
        $region18: #{forward.1} parent=11 // pred_check_branch
          %167 = sbr.rel (%p165) target = $region20
        $region19: #{forward.1} parent=11 // pred_region
          _
        $region20: #{forward.1} parent=11 // pred_fallthru
          _
        // Predicated region
        $region21: #{forward.1} parent=11 // pred_check
          %p168 = pneg %p100
        $region22: #{forward.1} parent=11 // pred_check_branch
          %170 = sbr.rel (%p168) target = $region24
        $region23: #{forward.1} parent=11 // pred_region
          _
        $region24: #{forward.1} parent=11 // pred_fallthru
          _
        // Predicated region
        $region25: #{forward.1} parent=11 // pred_check
          %p171 = pneg %p121
        $region26: #{forward.1} parent=11 // pred_check_branch
          %173 = sbr.rel (%p171) target = $region28
        $region27: #{forward.1} parent=11 // pred_region
          _
        $region28: #{forward.1} parent=11 // pred_fallthru
          _
      $region12: #{forward.1} parent=5 // pred_fallthru
        _
      %p174 = scmp.lt.s32.totalorder %s11, 2
      // Predicated region
      $region29: #{forward.1} parent=5 // pred_check
        %p175 = pneg %p174
      $region30: #{forward.1} parent=5 // pred_check_branch
        %177 = sbr.rel (%p175) target = $region32
      $region31: #{forward.1} parent=5 // pred_region
        // Predicated region
        $region33: #{forward.1} parent=31 // pred_check
          %p178 = pneg %p31
        $region34: #{forward.1} parent=31 // pred_check_branch
          %180 = sbr.rel (%p178) target = $region36
        $region35: #{forward.1} parent=31 // pred_region
          %s181 = sand.u32 %s21, 1
          %s182 = sand.u32 %s21, 1
          %s183 = smul.addr %s182, 32
          %s184 = scalar_lea.vmem [#allocation2], %s183
          %s185 = smul.addr %s11, 8
          %s186 = scalar_lea.vmem %s0, %s185
          // Predicated region
          $region37: #{forward.1} parent=35 // pred_check
            _
          $region38: #{forward.1} parent=35 // pred_check_branch
            %188 = sbr.rel (0) target = $region40
          $region39: #{forward.1} parent=35 // pred_region
            // Predicated region
            $region41: #{forward.1} parent=39 // pred_check
              _
            $region42: #{forward.1} parent=39 // pred_check_branch
              %190 = sbr.rel (0) target = $region44
            $region43: #{forward.1} parent=39 // pred_region
              // Predicated region
              $region56: #{forward.1} parent=43 // pred_check
                _
              $region57: #{forward.1} parent=43 // pred_check_branch
                %211 = sbr.rel (0) target = $region59
              $region58: #{forward.1} parent=43 // pred_region
                loop: start=0, step=1, limit=1
                $region60: #{forward.1} parent=58 // loop_pre_header
                  _
                $region61: #{forward.1} parent=58 // loop_header
                  %s213 = sphi 0, %s217
                  %p214 = scmp.ge.s32.totalorder %s213, 1
                  %s218 = sphi %s186, %s186
                  %s219 = sphi %s184, %s184
                $region62: #{forward.1} parent=58 // loop_header_branch
                  %216 = sbr.rel (%p214) target = $region66
                $region63: #{forward.1} parent=58 // loop_body
                  %v220 = vld [vmem:[%s218] sm:$0xff]
                  %221 = vst [vmem:[%s219] sm:$0xff] %v220
                  %v222 = vld [vmem:[%s218 + $0x10] sm:$0xff]
                  %223 = vst [vmem:[%s219 + $0x8] sm:$0xff] %v222
                  %v224 = vld [vmem:[%s218 + $0x20] sm:$0xff]
                  %225 = vst [vmem:[%s219 + $0x10] sm:$0xff] %v224
                  %v226 = vld [vmem:[%s218 + $0x30] sm:$0xff]
                  %227 = vst [vmem:[%s219 + $0x18] sm:$0xff] %v226
                $region64: #{forward.1} parent=58 // loop_footer
                  %s217 = sadd.s32 1, %s213
                $region65: #{forward.1} parent=58 // loop_footer_branch
                  %212 = sbr.rel target = $region61
                $region66: #{forward.1} parent=58 // loop_exit
                  _
              $region59: #{forward.1} parent=43 // pred_fallthru
                _
              // Predicated region
              $region67: #{forward.1} parent=43 // pred_check
                _
              $region68: #{forward.1} parent=43 // pred_check_branch
                %229 = sbr.rel target = $region70
              $region69: #{forward.1} parent=43 // pred_region
                _
              $region70: #{forward.1} parent=43 // pred_fallthru
                _
            $region44: #{forward.1} parent=39 // pred_fallthru
              _
            // Predicated region
            $region45: #{forward.1} parent=39 // pred_check
              _
            $region46: #{forward.1} parent=39 // pred_check_branch
              %192 = sbr.rel target = $region48
            $region47: #{forward.1} parent=39 // pred_region
              loop: start=0, step=1, limit=1
              $region49: #{forward.1} parent=47 // loop_pre_header
                _
              $region50: #{forward.1} parent=47 // loop_header
                %s195 = sphi 0, %s199
                %p196 = scmp.ge.s32.totalorder %s195, 1
                %s200 = sphi %s186, %s186
                %s201 = sphi %s184, %s184
              $region51: #{forward.1} parent=47 // loop_header_branch
                %198 = sbr.rel (%p196) target = $region55
              $region52: #{forward.1} parent=47 // loop_body
                %v202 = vld [vmem:[%s200] sm:$0xff]
                %203 = vst [vmem:[%s201] sm:$0xff] %v202
                %v204 = vld [vmem:[%s200 + $0x10] sm:$0xff]
                %205 = vst [vmem:[%s201 + $0x8] sm:$0xff] %v204
                %v206 = vld [vmem:[%s200 + $0x20] sm:$0xff]
                %207 = vst [vmem:[%s201 + $0x10] sm:$0xff] %v206
                %v208 = vld [vmem:[%s200 + $0x30] sm:$0xff]
                %209 = vst [vmem:[%s201 + $0x18] sm:$0xff] %v208
              $region53: #{forward.1} parent=47 // loop_footer
                %s199 = sadd.s32 1, %s195
              $region54: #{forward.1} parent=47 // loop_footer_branch
                %194 = sbr.rel target = $region50
              $region55: #{forward.1} parent=47 // loop_exit
                _
            $region48: #{forward.1} parent=39 // pred_fallthru
              _
          $region40: #{forward.1} parent=35 // pred_fallthru
            _
          %230 = vnop
        $region36: #{forward.1} parent=31 // pred_fallthru
          _
      $region32: #{forward.1} parent=5 // pred_fallthru
        _
      %p231 = scmp.le.s32.totalorder 1, %s11
      %p232 = scmp.lt.s32.totalorder %s11, 3
      %p233 = pnand %p231, %p232
      %p234 = pneg %p233
      // Predicated region
      $region71: #{forward.1} parent=5 // pred_check
        _
      $region72: #{forward.1} parent=5 // pred_check_branch
        %236 = sbr.rel (%p233) target = $region74
      $region73: #{forward.1} parent=5 // pred_region
        %s237 = ssub.s32 %s11, 1
        %s238 = sand.u32 %s24, 1
        %s239 = sand.u32 %s24, 1
        %s240 = smul.addr %s239, 32
        %s241 = scalar_lea.vmem [#allocation2], %s240
        // Predicated region
        $region75: #{forward.1} parent=73 // pred_check
          %p242 = pneg %p37
        $region76: #{forward.1} parent=73 // pred_check_branch
          %244 = sbr.rel (%p242) target = $region78
        $region77: #{forward.1} parent=73 // pred_region
          _
        $region78: #{forward.1} parent=73 // pred_fallthru
          _
        %s245 = sand.u32 %s24, 1
        %s246 = sand.u32 %s24, 1
        %s247 = smul.addr %s246, 32
        %s248 = scalar_lea.vmem [#allocation2], %s247
        %p249 = pneg %p37
        %p250 = pneg %p34
        %p251 = pneg %p58
        %p252 = pneg %p55
        %p253 = pneg %p79
        %p254 = pneg %p76
        %p255 = pneg %p100
        %p256 = pneg %p97
        %p257 = pneg %p121
        %p258 = pneg %p118
        %p259 = pneg %p147
        %p260 = pneg %p144
        %s261 = sand.u32 %s134, 1
        %s262 = sand.u32 %s134, 1
        %s263 = smul.addr %s262, 32
        %s264 = scalar_lea.vmem [#allocation3], %s263
        %v265 = vld [vmem:[%s2] sm:$0xff]
        %v266 = vld [vmem:[%s2 + $0x8] sm:$0xff]
        %v267 = vld [vmem:[%s2 + $0x10] sm:$0xff]
        %v268 = vld [vmem:[%s2 + $0x18] sm:$0xff]
        %v269 = vld [vmem:[%s2 + $0x20] sm:$0xff]
        %v270 = vld [vmem:[%s2 + $0x28] sm:$0xff]
        %v271 = vld [vmem:[%s2 + $0x30] sm:$0xff]
        %v272 = vld [vmem:[%s2 + $0x38] sm:$0xff]
        %v273 = vld [vmem:[%s241] sm:$0xff]
        %v274 = vld [vmem:[%s241 + $0x8] sm:$0xff]
        %v275 = vld [vmem:[%s241 + $0x10] sm:$0xff]
        %v276 = vld [vmem:[%s241 + $0x18] sm:$0xff]
        %vm277 = vcmask 261120
        %v279 = vsel %vm277, %v265, 0
        %v282 = vsel %vm277, %v266, 0
        %v285 = vsel %vm277, %v267, 0
        %v288 = vsel %vm277, %v268, 0
        %v291 = vsel %vm277, %v269, 0
        %v294 = vsel %vm277, %v270, 0
        %v297 = vsel %vm277, %v271, 0
        %v300 = vsel %vm277, %v272, 0
        %302 = vmatprep.subr.mxu0 0.0
        %303 = vmatpush1.msra.mxu0 %v273
        %304 = vmatprep.subr.mxu0 0.0
        %305 = vmatpush1.msra.mxu0 %v274
        %306 = vmatprep.subr.mxu0 0.0
        %307 = vmatpush1.msra.mxu0 %v275
        %308 = vmatprep.subr.mxu0 0.0
        %309 = vmatpush1.msra.mxu0 %v276
        %310 = vmatprep.subr.mxu0 0.0
        %311 = vmatpush1.msra.mxu0 0.0
        %312 = vmatprep.subr.mxu0 0.0
        %313 = vmatpush1.msra.mxu0 0.0
        %314 = vmatprep.subr.mxu0 0.0
        %315 = vmatpush1.msra.mxu0 0.0
        %316 = vmatprep.subr.mxu0 0.0
        %317 = vmatpush1.msra.mxu0 0.0
        %318 = vmatprep.subr.mxu0 0.0
        %319 = vmatpush1.msra.mxu0 0.0
        %320 = vmatprep.subr.mxu0 0.0
        %321 = vmatpush1.msra.mxu0 0.0
        %322 = vmatprep.subr.mxu0 0.0
        %323 = vmatpush1.msra.mxu0 0.0
        %324 = vmatprep.subr.mxu0 0.0
        %325 = vmatpush1.msra.mxu0 0.0
        %326 = vmatprep.subr.mxu0 0.0
        %327 = vmatpush1.msra.mxu0 0.0
        %328 = vmatprep.subr.mxu0 0.0
        %329 = vmatpush1.msra.mxu0 0.0
        %330 = vmatprep.subr.mxu0 0.0
        %331 = vmatpush1.msra.mxu0 0.0
        %332 = vmatprep.subr.mxu0 0.0
        %333 = vmatpush1.msra.mxu0 0.0
        %334 = vmatprep.subr.mxu0 0.0
        %335 = vmatpush1.msra.mxu0 0.0
        %336 = vmatprep.subr.mxu0 0.0
        %337 = vmatpush1.msra.mxu0 0.0
        %338 = vmatprep.subr.mxu0 0.0
        %339 = vmatpush1.msra.mxu0 0.0
        %340 = vmatprep.subr.mxu0 0.0
        %341 = vmatpush1.msra.mxu0 0.0
        %342 = vmatprep.subr.mxu0 0.0
        %343 = vmatpush1.msra.mxu0 0.0
        %344 = vmatprep.subr.mxu0 0.0
        %345 = vmatpush1.msra.mxu0 0.0
        %346 = vmatprep.subr.mxu0 0.0
        %347 = vmatpush1.msra.mxu0 0.0
        %348 = vmatprep.subr.mxu0 0.0
        %349 = vmatpush1.msra.mxu0 0.0
        %350 = vmatprep.subr.mxu0 0.0
        %351 = vmatpush1.msra.mxu0 0.0
        %352 = vmatprep.subr.mxu0 0.0
        %353 = vmatpush1.msra.mxu0 0.0
        %354 = vmatprep.subr.mxu0 0.0
        %355 = vmatpush1.msra.mxu0 0.0
        %356 = vmatprep.subr.mxu0 0.0
        %357 = vmatpush1.msra.mxu0 0.0
        %358 = vmatprep.subr.mxu0 0.0
        %359 = vmatpush1.msra.mxu0 0.0
        %360 = vmatprep.subr.mxu0 0.0
        %361 = vmatpush1.msra.mxu0 0.0
        %362 = vmatprep.subr.mxu0 0.0
        %363 = vmatpush1.msra.mxu0 0.0
        %364 = vmatprep.subr.mxu0 0.0
        %365 = vmatpush1.msra.mxu0 0.0
        %366 = vmatprep.mubr.f32.mxu0 0.0
        %367 = vmatmul.mubr.f32.gmra.mrb[0].mxu0 %v279
        %v368 = vpop.f32.mrb[0].mxu0
        %v369 = vadd.f32 0.0, %v368
        %v370 = vpop.f32.mrb[0].mxu0
        %371 = vmatprep.mubr.f32.mxu0 0.0
        %372 = vmatmul.mubr.f32.gmra.mrb[0].mxu0 %v282
        %v373 = vpop.f32.mrb[0].mxu0
        %v374 = vadd.f32 0.0, %v373
        %v375 = vpop.f32.mrb[0].mxu0
        %376 = vmatprep.mubr.f32.mxu0 0.0
        %377 = vmatmul.mubr.f32.gmra.mrb[0].mxu0 %v285
        %v378 = vpop.f32.mrb[0].mxu0
        %v379 = vadd.f32 0.0, %v378
        %v380 = vpop.f32.mrb[0].mxu0
        %381 = vmatprep.mubr.f32.mxu0 0.0
        %382 = vmatmul.mubr.f32.gmra.mrb[0].mxu0 %v288
        %v383 = vpop.f32.mrb[0].mxu0
        %v384 = vadd.f32 0.0, %v383
        %v385 = vpop.f32.mrb[0].mxu0
        %386 = vmatprep.mubr.f32.mxu0 0.0
        %387 = vmatmul.mubr.f32.gmra.mrb[0].mxu0 %v291
        %v388 = vpop.f32.mrb[0].mxu0
        %v389 = vadd.f32 0.0, %v388
        %v390 = vpop.f32.mrb[0].mxu0
        %391 = vmatprep.mubr.f32.mxu0 0.0
        %392 = vmatmul.mubr.f32.gmra.mrb[0].mxu0 %v294
        %v393 = vpop.f32.mrb[0].mxu0
        %v394 = vadd.f32 0.0, %v393
        %v395 = vpop.f32.mrb[0].mxu0
        %396 = vmatprep.mubr.f32.mxu0 0.0
        %397 = vmatmul.mubr.f32.gmra.mrb[0].mxu0 %v297
        %v398 = vpop.f32.mrb[0].mxu0
        %v399 = vadd.f32 0.0, %v398
        %v400 = vpop.f32.mrb[0].mxu0
        %401 = vmatprep.mubr.f32.mxu0 0.0
        %402 = vmatmul.mubr.f32.gmra.mrb[0].mxu0 %v300
        %v403 = vpop.f32.mrb[0].mxu0
        %v404 = vadd.f32 0.0, %v403
        %v405 = vpop.f32.mrb[0].mxu0
        %406 = vdwg.mxu0
        %v407 = vld [vmem:[%s1] sm:$0xff]
        %v408 = vld [vmem:[%s1 + $0x8] sm:$0xff]
        %v409 = vld [vmem:[%s1 + $0x10] sm:$0xff]
        %v410 = vld [vmem:[%s1 + $0x18] sm:$0xff]
        %v411 = vld [vmem:[%s1 + $0x20] sm:$0xff]
        %v412 = vld [vmem:[%s1 + $0x28] sm:$0xff]
        %v413 = vld [vmem:[%s1 + $0x30] sm:$0xff]
        %v414 = vld [vmem:[%s1 + $0x38] sm:$0xff]
        %v415 = vld [vmem:[%s1 + $0x40] sm:$0xff]
        %v416 = vld [vmem:[%s1 + $0x48] sm:$0xff]
        %v417 = vld [vmem:[%s1 + $0x50] sm:$0xff]
        %v418 = vld [vmem:[%s1 + $0x58] sm:$0xff]
        %v419 = vld [vmem:[%s1 + $0x60] sm:$0xff]
        %v420 = vld [vmem:[%s1 + $0x68] sm:$0xff]
        %v421 = vld [vmem:[%s1 + $0x70] sm:$0xff]
        %v422 = vld [vmem:[%s1 + $0x78] sm:$0xff]
        %v423 = vld [vmem:[%s3] sm:$0xff]
        %v424 = vld [vmem:[%s3 + $0x8] sm:$0xff]
        %v425 = vld [vmem:[%s3 + $0x10] sm:$0xff]
        %v426 = vld [vmem:[%s3 + $0x18] sm:$0xff]
        %v427 = vld [vmem:[%s3 + $0x20] sm:$0xff]
        %v428 = vld [vmem:[%s3 + $0x28] sm:$0xff]
        %v429 = vld [vmem:[%s3 + $0x30] sm:$0xff]
        %v430 = vld [vmem:[%s3 + $0x38] sm:$0xff]
        %431 = vmatprep.subr.mxu0 0.0
        %432 = vmatpush1.msra.mxu0 %v407
        %433 = vmatprep.subr.mxu0 0.0
        %434 = vmatpush1.msra.mxu0 %v408
        %435 = vmatprep.subr.mxu0 0.0
        %436 = vmatpush1.msra.mxu0 %v409
        %437 = vmatprep.subr.mxu0 0.0
        %438 = vmatpush1.msra.mxu0 %v410
        %439 = vmatprep.subr.mxu0 0.0
        %440 = vmatpush1.msra.mxu0 %v411
        %441 = vmatprep.subr.mxu0 0.0
        %442 = vmatpush1.msra.mxu0 %v412
        %443 = vmatprep.subr.mxu0 0.0
        %444 = vmatpush1.msra.mxu0 %v413
        %445 = vmatprep.subr.mxu0 0.0
        %446 = vmatpush1.msra.mxu0 %v414
        %447 = vmatprep.subr.mxu0 0.0
        %448 = vmatpush1.msra.mxu0 %v415
        %449 = vmatprep.subr.mxu0 0.0
        %450 = vmatpush1.msra.mxu0 %v416
        %451 = vmatprep.subr.mxu0 0.0
        %452 = vmatpush1.msra.mxu0 %v417
        %453 = vmatprep.subr.mxu0 0.0
        %454 = vmatpush1.msra.mxu0 %v418
        %455 = vmatprep.subr.mxu0 0.0
        %456 = vmatpush1.msra.mxu0 %v419
        %457 = vmatprep.subr.mxu0 0.0
        %458 = vmatpush1.msra.mxu0 %v420
        %459 = vmatprep.subr.mxu0 0.0
        %460 = vmatpush1.msra.mxu0 %v421
        %461 = vmatprep.subr.mxu0 0.0
        %462 = vmatpush1.msra.mxu0 %v422
        %463 = vmatprep.subr.mxu0 0.0
        %464 = vmatpush1.msra.mxu0 0.0
        %465 = vmatprep.subr.mxu0 0.0
        %466 = vmatpush1.msra.mxu0 0.0
        %467 = vmatprep.subr.mxu0 0.0
        %468 = vmatpush1.msra.mxu0 0.0
        %469 = vmatprep.subr.mxu0 0.0
        %470 = vmatpush1.msra.mxu0 0.0
        %471 = vmatprep.subr.mxu0 0.0
        %472 = vmatpush1.msra.mxu0 0.0
        %473 = vmatprep.subr.mxu0 0.0
        %474 = vmatpush1.msra.mxu0 0.0
        %475 = vmatprep.subr.mxu0 0.0
        %476 = vmatpush1.msra.mxu0 0.0
        %477 = vmatprep.subr.mxu0 0.0
        %478 = vmatpush1.msra.mxu0 0.0
        %479 = vmatprep.subr.mxu0 0.0
        %480 = vmatpush1.msra.mxu0 0.0
        %481 = vmatprep.subr.mxu0 0.0
        %482 = vmatpush1.msra.mxu0 0.0
        %483 = vmatprep.subr.mxu0 0.0
        %484 = vmatpush1.msra.mxu0 0.0
        %485 = vmatprep.subr.mxu0 0.0
        %486 = vmatpush1.msra.mxu0 0.0
        %487 = vmatprep.subr.mxu0 0.0
        %488 = vmatpush1.msra.mxu0 0.0
        %489 = vmatprep.subr.mxu0 0.0
        %490 = vmatpush1.msra.mxu0 0.0
        %491 = vmatprep.subr.mxu0 0.0
        %492 = vmatpush1.msra.mxu0 0.0
        %493 = vmatprep.subr.mxu0 0.0
        %494 = vmatpush1.msra.mxu0 0.0
        %495 = vmatprep.mubr.f32.mxu0 0.0
        %496 = vmatmul.mubr.f32.gmra.mrb[0].mxu0 %v369
        %v497 = vpop.f32.mrb[0].mxu0
        %v498 = vadd.f32 %v423, %v497
        %v499 = vpop.f32.mrb[0].mxu0
        %500 = vmatprep.mubr.f32.mxu0 0.0
        %501 = vmatmul.mubr.f32.gmra.mrb[0].mxu0 %v374
        %v502 = vpop.f32.mrb[0].mxu0
        %v503 = vadd.f32 %v424, %v502
        %v504 = vpop.f32.mrb[0].mxu0
        %505 = vmatprep.mubr.f32.mxu0 0.0
        %506 = vmatmul.mubr.f32.gmra.mrb[0].mxu0 %v379
        %v507 = vpop.f32.mrb[0].mxu0
        %v508 = vadd.f32 %v425, %v507
        %v509 = vpop.f32.mrb[0].mxu0
        %510 = vmatprep.mubr.f32.mxu0 0.0
        %511 = vmatmul.mubr.f32.gmra.mrb[0].mxu0 %v384
        %v512 = vpop.f32.mrb[0].mxu0
        %v513 = vadd.f32 %v426, %v512
        %v514 = vpop.f32.mrb[0].mxu0
        %515 = vmatprep.mubr.f32.mxu0 0.0
        %516 = vmatmul.mubr.f32.gmra.mrb[0].mxu0 %v389
        %v517 = vpop.f32.mrb[0].mxu0
        %v518 = vadd.f32 %v427, %v517
        %v519 = vpop.f32.mrb[0].mxu0
        %520 = vmatprep.mubr.f32.mxu0 0.0
        %521 = vmatmul.mubr.f32.gmra.mrb[0].mxu0 %v394
        %v522 = vpop.f32.mrb[0].mxu0
        %v523 = vadd.f32 %v428, %v522
        %v524 = vpop.f32.mrb[0].mxu0
        %525 = vmatprep.mubr.f32.mxu0 0.0
        %526 = vmatmul.mubr.f32.gmra.mrb[0].mxu0 %v399
        %v527 = vpop.f32.mrb[0].mxu0
        %v528 = vadd.f32 %v429, %v527
        %v529 = vpop.f32.mrb[0].mxu0
        %530 = vmatprep.mubr.f32.mxu0 0.0
        %531 = vmatmul.mubr.f32.gmra.mrb[0].mxu0 %v404
        %v532 = vpop.f32.mrb[0].mxu0
        %v533 = vadd.f32 %v430, %v532
        %v534 = vpop.f32.mrb[0].mxu0
        %535 = vdwg.mxu0
        %v536 = vmax.f32 %v498, 0.0
        %v537 = vmax.f32 %v503, 0.0
        %v538 = vmax.f32 %v508, 0.0
        %v539 = vmax.f32 %v513, 0.0
        %v540 = vmax.f32 %v518, 0.0
        %v541 = vmax.f32 %v523, 0.0
        %v542 = vmax.f32 %v528, 0.0
        %v543 = vmax.f32 %v533, 0.0
        %v544 = vld [vmem:[%s4] sm:$0xff]
        %v545 = vld [vmem:[%s4 + $0x8] sm:$0xff]
        %v546 = vld [vmem:[%s4 + $0x10] sm:$0xff]
        %v547 = vld [vmem:[%s4 + $0x18] sm:$0xff]
        %vm548 = vcmask 523264
        %v550 = vsel %vm548, %v544, 0
        %v553 = vsel %vm548, %v545, 0
        %v556 = vsel %vm548, %v546, 0
        %v559 = vsel %vm548, %v547, 0
        %561 = vmatprep.subr.mxu0 0.0
        %562 = vmatpush1.msra.mxu0 %v536
        %563 = vmatprep.subr.mxu0 0.0
        %564 = vmatpush1.msra.mxu0 %v537
        %565 = vmatprep.subr.mxu0 0.0
        %566 = vmatpush1.msra.mxu0 %v538
        %567 = vmatprep.subr.mxu0 0.0
        %568 = vmatpush1.msra.mxu0 %v539
        %569 = vmatprep.subr.mxu0 0.0
        %570 = vmatpush1.msra.mxu0 %v540
        %571 = vmatprep.subr.mxu0 0.0
        %572 = vmatpush1.msra.mxu0 %v541
        %573 = vmatprep.subr.mxu0 0.0
        %574 = vmatpush1.msra.mxu0 %v542
        %575 = vmatprep.subr.mxu0 0.0
        %576 = vmatpush1.msra.mxu0 %v543
        %577 = vmatprep.subr.mxu0 0.0
        %578 = vmatpush1.msra.mxu0 0.0
        %579 = vmatprep.subr.mxu0 0.0
        %580 = vmatpush1.msra.mxu0 0.0
        %581 = vmatprep.subr.mxu0 0.0
        %582 = vmatpush1.msra.mxu0 0.0
        %583 = vmatprep.subr.mxu0 0.0
        %584 = vmatpush1.msra.mxu0 0.0
        %585 = vmatprep.subr.mxu0 0.0
        %586 = vmatpush1.msra.mxu0 0.0
        %587 = vmatprep.subr.mxu0 0.0
        %588 = vmatpush1.msra.mxu0 0.0
        %589 = vmatprep.subr.mxu0 0.0
        %590 = vmatpush1.msra.mxu0 0.0
        %591 = vmatprep.subr.mxu0 0.0
        %592 = vmatpush1.msra.mxu0 0.0
        %593 = vmatprep.subr.mxu0 0.0
        %594 = vmatpush1.msra.mxu0 0.0
        %595 = vmatprep.subr.mxu0 0.0
        %596 = vmatpush1.msra.mxu0 0.0
        %597 = vmatprep.subr.mxu0 0.0
        %598 = vmatpush1.msra.mxu0 0.0
        %599 = vmatprep.subr.mxu0 0.0
        %600 = vmatpush1.msra.mxu0 0.0
        %601 = vmatprep.subr.mxu0 0.0
        %602 = vmatpush1.msra.mxu0 0.0
        %603 = vmatprep.subr.mxu0 0.0
        %604 = vmatpush1.msra.mxu0 0.0
        %605 = vmatprep.subr.mxu0 0.0
        %606 = vmatpush1.msra.mxu0 0.0
        %607 = vmatprep.subr.mxu0 0.0
        %608 = vmatpush1.msra.mxu0 0.0
        %609 = vmatprep.subr.mxu0 0.0
        %610 = vmatpush1.msra.mxu0 0.0
        %611 = vmatprep.subr.mxu0 0.0
        %612 = vmatpush1.msra.mxu0 0.0
        %613 = vmatprep.subr.mxu0 0.0
        %614 = vmatpush1.msra.mxu0 0.0
        %615 = vmatprep.subr.mxu0 0.0
        %616 = vmatpush1.msra.mxu0 0.0
        %617 = vmatprep.subr.mxu0 0.0
        %618 = vmatpush1.msra.mxu0 0.0
        %619 = vmatprep.subr.mxu0 0.0
        %620 = vmatpush1.msra.mxu0 0.0
        %621 = vmatprep.subr.mxu0 0.0
        %622 = vmatpush1.msra.mxu0 0.0
        %623 = vmatprep.subr.mxu0 0.0
        %624 = vmatpush1.msra.mxu0 0.0
        %625 = vmatprep.mubr.f32.mxu0 0.0
        %626 = vmatmul.mubr.f32.gmra.mrb[0].mxu0 %v550
        %v627 = vpop.f32.mrb[0].mxu0
        %v628 = vadd.f32 0.0, %v627
        %v629 = vpop.f32.mrb[0].mxu0
        %630 = vmatprep.mubr.f32.mxu0 0.0
        %631 = vmatmul.mubr.f32.gmra.mrb[0].mxu0 %v553
        %v632 = vpop.f32.mrb[0].mxu0
        %v633 = vadd.f32 0.0, %v632
        %v634 = vpop.f32.mrb[0].mxu0
        %635 = vmatprep.mubr.f32.mxu0 0.0
        %636 = vmatmul.mubr.f32.gmra.mrb[0].mxu0 %v556
        %v637 = vpop.f32.mrb[0].mxu0
        %v638 = vadd.f32 0.0, %v637
        %v639 = vpop.f32.mrb[0].mxu0
        %640 = vmatprep.mubr.f32.mxu0 0.0
        %641 = vmatmul.mubr.f32.gmra.mrb[0].mxu0 %v559
        %v642 = vpop.f32.mrb[0].mxu0
        %v643 = vadd.f32 0.0, %v642
        %v644 = vpop.f32.mrb[0].mxu0
        %645 = vdwg.mxu0
        %646 = vst [vmem:[%s264] sm:$0xff] %v628
        %647 = vst [vmem:[%s264 + $0x8] sm:$0xff] %v633
        %648 = vst [vmem:[%s264 + $0x10] sm:$0xff] %v638
        %649 = vst [vmem:[%s264 + $0x18] sm:$0xff] %v643
        %s650 = sand.u32 %s134, 1
        %s651 = sand.u32 %s134, 1
        %s652 = smul.addr %s651, 32
        %s653 = scalar_lea.vmem [#allocation3], %s652
        // Predicated region
        $region79: #{forward.1} parent=73 // pred_check
          %p654 = pneg %p144
        $region80: #{forward.1} parent=73 // pred_check_branch
          %656 = sbr.rel (%p654) target = $region82
        $region81: #{forward.1} parent=73 // pred_region
          %s657 = smul.addr %s16, 8
          %s658 = scalar_lea.vmem %s5, %s657
          // Predicated region
          $region83: #{forward.1} parent=81 // pred_check
            _
          $region84: #{forward.1} parent=81 // pred_check_branch
            %660 = sbr.rel (0) target = $region86
          $region85: #{forward.1} parent=81 // pred_region
            // Predicated region
            $region87: #{forward.1} parent=85 // pred_check
              _
            $region88: #{forward.1} parent=85 // pred_check_branch
              %662 = sbr.rel (0) target = $region90
            $region89: #{forward.1} parent=85 // pred_region
              // Predicated region
              $region102: #{forward.1} parent=89 // pred_check
                _
              $region103: #{forward.1} parent=89 // pred_check_branch
                %683 = sbr.rel (0) target = $region105
              $region104: #{forward.1} parent=89 // pred_region
                loop: start=0, step=1, limit=1
                $region106: #{forward.1} parent=104 // loop_pre_header
                  _
                $region107: #{forward.1} parent=104 // loop_header
                  %s685 = sphi 0, %s689
                  %p686 = scmp.ge.s32.totalorder %s685, 1
                  %s690 = sphi %s653, %s653
                  %s691 = sphi %s658, %s658
                $region108: #{forward.1} parent=104 // loop_header_branch
                  %688 = sbr.rel (%p686) target = $region112
                $region109: #{forward.1} parent=104 // loop_body
                  %v692 = vld [vmem:[%s690] sm:$0xff]
                  %693 = vst [vmem:[%s691] sm:$0xff] %v692
                  %v694 = vld [vmem:[%s690 + $0x8] sm:$0xff]
                  %695 = vst [vmem:[%s691 + $0x10] sm:$0xff] %v694
                  %v696 = vld [vmem:[%s690 + $0x10] sm:$0xff]
                  %697 = vst [vmem:[%s691 + $0x20] sm:$0xff] %v696
                  %v698 = vld [vmem:[%s690 + $0x18] sm:$0xff]
                  %699 = vst [vmem:[%s691 + $0x30] sm:$0xff] %v698
                $region110: #{forward.1} parent=104 // loop_footer
                  %s689 = sadd.s32 1, %s685
                $region111: #{forward.1} parent=104 // loop_footer_branch
                  %684 = sbr.rel target = $region107
                $region112: #{forward.1} parent=104 // loop_exit
                  _
              $region105: #{forward.1} parent=89 // pred_fallthru
                _
              // Predicated region
              $region113: #{forward.1} parent=89 // pred_check
                _
              $region114: #{forward.1} parent=89 // pred_check_branch
                %701 = sbr.rel target = $region116
              $region115: #{forward.1} parent=89 // pred_region
                _
              $region116: #{forward.1} parent=89 // pred_fallthru
                _
            $region90: #{forward.1} parent=85 // pred_fallthru
              _
            // Predicated region
            $region91: #{forward.1} parent=85 // pred_check
              _
            $region92: #{forward.1} parent=85 // pred_check_branch
              %664 = sbr.rel target = $region94
            $region93: #{forward.1} parent=85 // pred_region
              loop: start=0, step=1, limit=1
              $region95: #{forward.1} parent=93 // loop_pre_header
                _
              $region96: #{forward.1} parent=93 // loop_header
                %s667 = sphi 0, %s671
                %p668 = scmp.ge.s32.totalorder %s667, 1
                %s672 = sphi %s653, %s653
                %s673 = sphi %s658, %s658
              $region97: #{forward.1} parent=93 // loop_header_branch
                %670 = sbr.rel (%p668) target = $region101
              $region98: #{forward.1} parent=93 // loop_body
                %v674 = vld [vmem:[%s672] sm:$0xff]
                %675 = vst [vmem:[%s673] sm:$0xff] %v674
                %v676 = vld [vmem:[%s672 + $0x8] sm:$0xff]
                %677 = vst [vmem:[%s673 + $0x10] sm:$0xff] %v676
                %v678 = vld [vmem:[%s672 + $0x10] sm:$0xff]
                %679 = vst [vmem:[%s673 + $0x20] sm:$0xff] %v678
                %v680 = vld [vmem:[%s672 + $0x18] sm:$0xff]
                %681 = vst [vmem:[%s673 + $0x30] sm:$0xff] %v680
              $region99: #{forward.1} parent=93 // loop_footer
                %s671 = sadd.s32 1, %s667
              $region100: #{forward.1} parent=93 // loop_footer_branch
                %666 = sbr.rel target = $region96
              $region101: #{forward.1} parent=93 // loop_exit
                _
            $region94: #{forward.1} parent=85 // pred_fallthru
              _
          $region86: #{forward.1} parent=81 // pred_fallthru
            _
          %702 = vnop
        $region82: #{forward.1} parent=73 // pred_fallthru
          _
      $region74: #{forward.1} parent=5 // pred_fallthru
        _
      %p703 = scmp.le.s32.totalorder 2, %s11
      // Predicated region
      $region117: #{forward.1} parent=5 // pred_check
        %p704 = pneg %p703
      $region118: #{forward.1} parent=5 // pred_check_branch
        %706 = sbr.rel (%p704) target = $region120
      $region119: #{forward.1} parent=5 // pred_region
        %s707 = ssub.s32 %s11, 2
        // Predicated region
        $region121: #{forward.1} parent=119 // pred_check
          %p708 = pneg %p150
        $region122: #{forward.1} parent=119 // pred_check_branch
          %710 = sbr.rel (%p708) target = $region124
        $region123: #{forward.1} parent=119 // pred_region
          %s711 = sand.u32 %s135, 1
          %s712 = sand.u32 %s135, 1
          %s713 = smul.addr %s712, 32
          %s714 = scalar_lea.vmem [#allocation3], %s713
        $region124: #{forward.1} parent=119 // pred_fallthru
          _
      $region120: #{forward.1} parent=5 // pred_fallthru
        _
    $region6: #{forward.1} parent=1 // loop_footer
      %s15 = sadd.s32 1, %s11
    $region7: #{forward.1} parent=1 // loop_footer_branch
      %10 = sbr.rel target = $region3
    $region8: #{forward.1} parent=1 // loop_exit
      _

</llo_original>
